<compile_context>
chip_gen: v5e
topology: v5e:2x2
jax: 0.10.0
libtpu: 0.0.40
codegen_flags: <defaults>
</compile_context>

<pallas_src>
import functools

import jax
import jax.numpy as jnp
from jax.experimental import pallas as pl
from jax.experimental.pallas import tpu as pltpu

LANE = 128      # TPU lane width; all feature dims padded to a multiple of this
SUBLANE = 8     # f32 sublane tile


def _round_up(x, m):
    return (x + m - 1) // m * m


def _fused_mlp_kernel(x_ref, *refs, num_layers):
    """Entire MLP in one kernel invocation.

    refs = (w_ref_0, ..., w_ref_{num_layers-1}, o_ref).
    Each layer:  h <- ReLU(h @ W_i)   (input_scale already folded into W_i,
    ReLU skipped on the last layer).  MXU inputs are bf16, accumulation f32.
    Intermediate activations stay in VMEM/vregs for the whole chain.
    """
    w_refs = refs[:num_layers]
    o_ref = refs[num_layers]

    h = x_ref[...].astype(jnp.bfloat16)
    acc = None
    for i in range(num_layers):
        acc = jnp.dot(h, w_refs[i][...], preferred_element_type=jnp.float32)
        if i < num_layers - 1:
            acc = jnp.maximum(acc, 0.0)          # ReLU on the f32 accumulator
            h = acc.astype(jnp.bfloat16)
    o_ref[...] = acc.astype(o_ref.dtype)


def init_dnn_params(key, layers, std=0.01):
    """torch.nn.init.uniform_(w, a=-std/2, b=std/2); weight shape (out, in)."""
    params = []
    for i in range(len(layers) - 1):
        key, sub = jax.random.split(key)
        w = jax.random.uniform(
            sub,
            (layers[i + 1], layers[i]),   # torch Linear weight layout (out, in)
            dtype=jnp.float32,
            minval=-std / 2.0,
            maxval=std / 2.0,
        )
        params.append(w)
    return params


def prep_params(weights, input_scale):
    """One-time weight preparation (done once, NOT per forward call).

    transpose -> fold input_scale -> zero-pad to 128-lane multiples -> bf16.
    Returns a list of (K_pad, N_pad) bfloat16 arrays.
    """
    prepped = []
    for w in weights:
        out_f, in_f = w.shape
        wt = jnp.transpose(w).astype(jnp.float32) * input_scale  # (in, out), scale folded
        k_pad = _round_up(in_f, LANE)
        n_pad = _round_up(out_f, LANE)
        wt = jnp.pad(wt, ((0, k_pad - in_f), (0, n_pad - out_f)))
        prepped.append(wt.astype(jnp.bfloat16))
    return prepped


@functools.partial(jax.jit, static_argnames=("out_features", "block_m"))
def dnn_forward(x, prepped_weights, *, out_features, block_m=8):
    """Mirrors DNN.forward: Flatten, then Linear(x*scale) [+ReLU except last]."""
    # Flatten (glue): NCHW -> (batch, C*H*W), same as torch.nn.Flatten.
    m = x.shape[0]
    x = x.reshape(m, -1).astype(jnp.float32)
    k0 = x.shape[1]

    num_layers = len(prepped_weights)
    k0_pad = prepped_weights[0].shape[0]
    n_last_pad = prepped_weights[-1].shape[1]

    # Pad batch to the tile size and features to the padded K of layer 0.
    m_pad = _round_up(m, block_m)
    x = jnp.pad(x, ((0, m_pad - m), (0, k0_pad - k0)))

    grid = (m_pad // block_m,)

    in_specs = [pl.BlockSpec((block_m, k0_pad), lambda i: (i, 0))]
    for w in prepped_weights:
        # Whole weight resident in VMEM; block index constant across the grid
        # so it is fetched once, not per batch tile.
        in_specs.append(pl.BlockSpec(w.shape, lambda i: (0, 0)))
    out_spec = pl.BlockSpec((block_m, n_last_pad), lambda i: (i, 0))

    # TODO(synk): for large hidden widths (bf16 K*N per layer beyond a few MiB)
    # switch to a per-layer tiled (M, N, K) grid with an f32 VMEM accumulator
    # and pl.when init/finalize instead of whole-weight VMEM residency.

    kernel = functools.partial(_fused_mlp_kernel, num_layers=num_layers)

    out = pl.pallas_call(
        kernel,
        out_shape=jax.ShapeDtypeStruct((m_pad, n_last_pad), jnp.float32),
        grid=grid,
        in_specs=in_specs,
        out_specs=out_spec,
        compiler_params=pltpu.CompilerParams(
            dimension_semantics=("parallel",),   # batch tiles shard across TCs (v7x)
        ),
    )(x, *prepped_weights)

    # Strip batch / lane padding (glue).
    return out[:m, :out_features]


if __name__ == "__main__":
    # Small shapes: input NCHW (16, 4, 4, 4) -> flatten to 64 features.
    layers = [64, 256, 128, 32]
    input_scale = 0.001
    batch = 16

    key = jax.random.PRNGKey(0)
    key, xkey = jax.random.split(key)
    x = jax.random.normal(xkey, (batch, 4, 4, 4), dtype=jnp.float32)

    params = init_dnn_params(key, layers, std=0.01)          # torch (out, in) layout
    prepped = prep_params(params, input_scale)                # one-time prep

    out = dnn_forward(x, prepped, out_features=layers[-1], block_m=8)
    out = jax.block_until_ready(out)

    # sanity: shape must be (batch, layers[-1]) and values finite
    assert out.shape == (batch, layers[-1]), out.shape
    assert bool(jnp.all(jnp.isfinite(out)))

    # correctness vs a pure-JAX f32 reference of the torch forward
    # (bf16 weights/activations on the MXU -> small, bounded deviation)
    ref = x.reshape(batch, -1).astype(jnp.float32)
    for i, w in enumerate(params):
        ref = (ref * input_scale) @ w.T
        if i < len(params) - 1:
            ref = jnp.maximum(ref, 0.0)
    tol = 0.1 * float(jnp.max(jnp.abs(ref))) + 1e-30
    max_err = float(jnp.max(jnp.abs(out - ref)))
    assert max_err <= tol, (max_err, tol)

    print("KERNEL_OK")
</pallas_src>

<mosaic_0001>
module attributes {stable_mosaic.version = 11 : i64} {
  func.func @_fused_mlp_kernel(%arg0: i32, %arg1: memref<8x128xf32, #tpu.memory_space<vmem>>, %arg2: memref<128x256xbf16, #tpu.memory_space<vmem>>, %arg3: memref<256x128xbf16, #tpu.memory_space<vmem>>, %arg4: memref<128x128xbf16, #tpu.memory_space<vmem>>, %arg5: memref<8x128xf32, #tpu.memory_space<vmem>>) attributes {dimension_semantics = [#tpu.dimension_semantics<parallel>], iteration_bounds = array<i64: 2>, scalar_prefetch = 0 : i64, scratch_operands = 0 : i64, tpu.core_type = #tpu.core_type<tc>, window_params = [{transform_indices = @transform_0, window_bounds = array<i64: 8, 128>}, {pipeline_mode = #tpu.pipeline_mode<synchronous>, transform_indices = @transform_1, window_bounds = array<i64: 128, 256>}, {pipeline_mode = #tpu.pipeline_mode<synchronous>, transform_indices = @transform_2, window_bounds = array<i64: 256, 128>}, {pipeline_mode = #tpu.pipeline_mode<synchronous>, transform_indices = @transform_3, window_bounds = array<i64: 128, 128>}, {transform_indices = @transform_4, window_bounds = array<i64: 8, 128>}]} {
    %c0 = arith.constant 0 : index
    %c0_0 = arith.constant 0 : index
    %0 = vector.load %arg1[%c0, %c0_0] : memref<8x128xf32, #tpu.memory_space<vmem>>, vector<8x128xf32>
    %1 = arith.truncf %0 : vector<8x128xf32> to vector<8x128xbf16>
    %c0_1 = arith.constant 0 : index
    %c0_2 = arith.constant 0 : index
    %2 = vector.load %arg2[%c0_1, %c0_2] : memref<128x256xbf16, #tpu.memory_space<vmem>>, vector<128x256xbf16>
    %cst = arith.constant dense<0.000000e+00> : vector<8x256xf32>
    %3 = tpu.matmul %1, %2, %cst {dimension_numbers = #tpu.dot_dimension_numbers<[1], [0], [0], [1], [0, 0, 1, 1], [], []>} : vector<8x128xbf16>, vector<128x256xbf16>, vector<8x256xf32> -> vector<8x256xf32>
    %cst_3 = arith.constant 0.000000e+00 : f32
    %4 = vector.broadcast %cst_3 : f32 to vector<8x256xf32>
    %5 = arith.maximumf %3, %4 : vector<8x256xf32>
    %6 = arith.truncf %5 : vector<8x256xf32> to vector<8x256xbf16>
    %c0_4 = arith.constant 0 : index
    %c0_5 = arith.constant 0 : index
    %7 = vector.load %arg3[%c0_4, %c0_5] : memref<256x128xbf16, #tpu.memory_space<vmem>>, vector<256x128xbf16>
    %cst_6 = arith.constant dense<0.000000e+00> : vector<8x128xf32>
    %8 = tpu.matmul %6, %7, %cst_6 {dimension_numbers = #tpu.dot_dimension_numbers<[1], [0], [0], [1], [0, 0, 1, 1], [], []>} : vector<8x256xbf16>, vector<256x128xbf16>, vector<8x128xf32> -> vector<8x128xf32>
    %cst_7 = arith.constant 0.000000e+00 : f32
    %9 = vector.broadcast %cst_7 : f32 to vector<8x128xf32>
    %10 = arith.maximumf %8, %9 : vector<8x128xf32>
    %11 = arith.truncf %10 : vector<8x128xf32> to vector<8x128xbf16>
    %c0_8 = arith.constant 0 : index
    %c0_9 = arith.constant 0 : index
    %12 = vector.load %arg4[%c0_8, %c0_9] : memref<128x128xbf16, #tpu.memory_space<vmem>>, vector<128x128xbf16>
    %cst_10 = arith.constant dense<0.000000e+00> : vector<8x128xf32>
    %13 = tpu.matmul %11, %12, %cst_10 {dimension_numbers = #tpu.dot_dimension_numbers<[1], [0], [0], [1], [0, 0, 1, 1], [], []>} : vector<8x128xbf16>, vector<128x128xbf16>, vector<8x128xf32> -> vector<8x128xf32>
    %c0_11 = arith.constant 0 : index
    %c0_12 = arith.constant 0 : index
    %14 = vector.load %arg5[%c0_11, %c0_12] : memref<8x128xf32, #tpu.memory_space<vmem>>, vector<8x128xf32>
    tpu.vector_store %arg5[%c0_11, %c0_12], %13 {strides = array<i32>} : memref<8x128xf32, #tpu.memory_space<vmem>>, vector<8x128xf32>,
    return
  }
  func.func @transform_0(%arg0: i32) -> (i32, i32) {
    %c0_i32 = arith.constant 0 : i32
    %c0_i32_0 = arith.constant 0 : i32
    return %arg0, %c0_i32 : i32, i32
  }
  func.func @transform_1(%arg0: i32) -> (i32, i32) {
    %c0_i32 = arith.constant 0 : i32
    %c0_i32_0 = arith.constant 0 : i32
    %c0_i32_1 = arith.constant 0 : i32
    return %c0_i32, %c0_i32_0 : i32, i32
  }
  func.func @transform_2(%arg0: i32) -> (i32, i32) {
    %c0_i32 = arith.constant 0 : i32
    %c0_i32_0 = arith.constant 0 : i32
    %c0_i32_1 = arith.constant 0 : i32
    return %c0_i32, %c0_i32_0 : i32, i32
  }
  func.func @transform_3(%arg0: i32) -> (i32, i32) {
    %c0_i32 = arith.constant 0 : i32
    %c0_i32_0 = arith.constant 0 : i32
    %c0_i32_1 = arith.constant 0 : i32
    return %c0_i32, %c0_i32_0 : i32, i32
  }
  func.func @transform_4(%arg0: i32) -> (i32, i32) {
    %c0_i32 = arith.constant 0 : i32
    %c0_i32_0 = arith.constant 0 : i32
    return %arg0, %c0_i32 : i32, i32
  }
}

</mosaic_0001>

<llo_original>
// kernel: dnn_forward.1
$region0: #{dnn_forward.1}
  #allocation0 [shape = 'u32[]', space=smem, size = 0x4, offset = 0x4, fixed_abs, tag = 'smem constant byte address 0x4 - core index']
  #allocation1 [shape = 'u32[72,128]{1,0:T(1,128)}', space=vmem, size = 0x9000, scoped, tag = 'internal scratch']
  %s0 = inlined_call_operand.vmem [shape: f32[16,128], index: 0, kind: input, shape index: {}]
  %s1 = inlined_call_operand.hbm [shape: bf16[128,256], index: 1, kind: input, shape index: {}]
  %s2 = inlined_call_operand.hbm [shape: bf16[256,128], index: 2, kind: input, shape index: {}]
  %s3 = inlined_call_operand.vmem [shape: bf16[128,128], index: 3, kind: input, shape index: {}]
  %s4 = inlined_call_operand.hbm [shape: f32[16,128], index: 4, kind: output, shape index: {}]
  %s5 = sld [smem:[#allocation0]]
  $region57: #{dnn_forward.1} parent=0
    _
  %s7 = ssub.s32 1, %s5
  %s8 = scalar_select 0, %s7, %s5
  $region1: #{dnn_forward.1} parent=0
    #allocation2 [shape = 'u8[65536]{0}', space=vmem, size = 0x10000, scoped, tag = 'input window, operand 1, single buffered']
    #allocation3 [shape = 's32[2]{0}', space=sflag, size = 0x8, scoped, tag = 'scoped memory for dnn_forward.1']
    #allocation4 [shape = 's32[2]{0}', space=sflag, size = 0x8, scoped, tag = 'scoped memory for dnn_forward.1']
    #allocation5 [shape = 'u8[65536]{0}', space=vmem, size = 0x10000, scoped, tag = 'input window, operand 2, single buffered']
    #allocation6 [shape = 's32[1]{0}', space=sflag, size = 0x4, scoped, tag = 'scoped memory for dnn_forward.1']
    #allocation7 [shape = 'u8[8192]{0}', space=vmem, size = 0x2000, scoped, tag = 'output window, operand 0']
    %9 = vsyncpa [#allocation3], 0
    %10 = vsyncpa [#allocation6], 0
    %11 = vsyncpa [#allocation4], 0
    %s12 = scalar_lea.sflag [#allocation4], 1
    %13 = vsyncpa %s12, 0
    loop: start=0, step=1, limit=4
    $region2: #{dnn_forward.1} parent=1 // loop_pre_header
      _
    $region3: #{dnn_forward.1} parent=1 // loop_header
      %s15 = sphi 0, %s19
      %p16 = scmp.ge.s32.totalorder %s15, 4
      %s25 = sphi 0, %s27
      %s28 = sphi 0, %s25
      %s29 = sphi 0, %s28
      %s45 = sphi 0, %s29
      %s49 = sphi 0, %s49
      %s51 = sphi 0, %s49
      %s52 = sphi 0, %s51
      %s66 = sphi 0, %s52
      %s70 = sphi 0, %s70
      %s72 = sphi 0, %s70
      %s73 = sphi 0, %s72
      %s87 = sphi 0, %s73
      %s91 = sphi 0, %s91
      %s93 = sphi 0, %s91
      %s94 = sphi 0, %s93
      %s108 = sphi 0, %s94
      %s114 = sphi 0, %s116
      %s117 = sphi 0, %s114
      %s118 = sphi 0, %s117
      %s134 = sphi 0, %s118
    $region4: #{dnn_forward.1} parent=1 // loop_header_branch
      %18 = sbr.rel (%p16) target = $region8
    $region5: #{dnn_forward.1} parent=1 // loop_body
      %s20 = ssub.s32 %s15, 1
      %s21 = ssub.s32 %s15, 2
      %s22 = sadd.s32 %s15, 1
      %s23 = ssub.s32 %s15, %s22
      %p24 = scmp.eq.s32.totalorder %s23, 0
      %s26 = sadd.s32 %s25, 1
      %s27 = scalar_select %p24, %s25, %s26
      %p30 = pneg %p24
      %p31 = scmp.eq.s32.totalorder %s15, 1
      %p32 = por %p30, %p31
      %p33 = scmp.ne.s32.totalorder %s25, %s28
      %p34 = scmp.eq.s32.totalorder %s15, 0
      %p35 = por %p33, %p34
      %p36 = scmp.ne.s32.totalorder %s25, %s28
      %p37 = scmp.eq.s32.totalorder %s20, 1
      %p38 = por %p36, %p37
      %p39 = scmp.ne.s32.totalorder %s28, %s29
      %p40 = scmp.eq.s32.totalorder %s20, 0
      %p41 = por %p39, %p40
      %p42 = scmp.ne.s32.totalorder %s28, %s29
      %p43 = scmp.eq.s32.totalorder %s21, 1
      %p44 = por %p42, %p43
      %p46 = scmp.ne.s32.totalorder %s29, %s45
      %p47 = scmp.eq.s32.totalorder %s21, 0
      %p48 = por %p46, %p47
      %s50 = sadd.s32 %s49, 1
      %p53 = scmp.eq.s32.totalorder %s15, 1
      %p54 = scmp.ne.s32.totalorder %s49, %s51
      %p55 = scmp.eq.s32.totalorder %s15, 0
      %p56 = por %p54, %p55
      %p57 = scmp.ne.s32.totalorder %s49, %s51
      %p58 = scmp.eq.s32.totalorder %s20, 1
      %p59 = por %p57, %p58
      %p60 = scmp.ne.s32.totalorder %s51, %s52
      %p61 = scmp.eq.s32.totalorder %s20, 0
      %p62 = por %p60, %p61
      %p63 = scmp.ne.s32.totalorder %s51, %s52
      %p64 = scmp.eq.s32.totalorder %s21, 1
      %p65 = por %p63, %p64
      %p67 = scmp.ne.s32.totalorder %s52, %s66
      %p68 = scmp.eq.s32.totalorder %s21, 0
      %p69 = por %p67, %p68
      %s71 = sadd.s32 %s70, 1
      %p74 = scmp.eq.s32.totalorder %s15, 1
      %p75 = scmp.ne.s32.totalorder %s70, %s72
      %p76 = scmp.eq.s32.totalorder %s15, 0
      %p77 = por %p75, %p76
      %p78 = scmp.ne.s32.totalorder %s70, %s72
      %p79 = scmp.eq.s32.totalorder %s20, 1
      %p80 = por %p78, %p79
      %p81 = scmp.ne.s32.totalorder %s72, %s73
      %p82 = scmp.eq.s32.totalorder %s20, 0
      %p83 = por %p81, %p82
      %p84 = scmp.ne.s32.totalorder %s72, %s73
      %p85 = scmp.eq.s32.totalorder %s21, 1
      %p86 = por %p84, %p85
      %p88 = scmp.ne.s32.totalorder %s73, %s87
      %p89 = scmp.eq.s32.totalorder %s21, 0
      %p90 = por %p88, %p89
      %s92 = sadd.s32 %s91, 1
      %p95 = scmp.eq.s32.totalorder %s15, 1
      %p96 = scmp.ne.s32.totalorder %s91, %s93
      %p97 = scmp.eq.s32.totalorder %s15, 0
      %p98 = por %p96, %p97
      %p99 = scmp.ne.s32.totalorder %s91, %s93
      %p100 = scmp.eq.s32.totalorder %s20, 1
      %p101 = por %p99, %p100
      %p102 = scmp.ne.s32.totalorder %s93, %s94
      %p103 = scmp.eq.s32.totalorder %s20, 0
      %p104 = por %p102, %p103
      %p105 = scmp.ne.s32.totalorder %s93, %s94
      %p106 = scmp.eq.s32.totalorder %s21, 1
      %p107 = por %p105, %p106
      %p109 = scmp.ne.s32.totalorder %s94, %s108
      %p110 = scmp.eq.s32.totalorder %s21, 0
      %p111 = por %p109, %p110
      %s112 = ssub.s32 %s15, %s22
      %p113 = scmp.eq.s32.totalorder %s112, 0
      %s115 = sadd.s32 %s114, 1
      %s116 = scalar_select %p113, %s114, %s115
      %p119 = pneg %p113
      %p120 = scmp.eq.s32.totalorder %s15, 1
      %p121 = por %p119, %p120
      %p122 = scmp.ne.s32.totalorder %s114, %s117
      %p123 = scmp.eq.s32.totalorder %s15, 0
      %p124 = por %p122, %p123
      %p125 = scmp.ne.s32.totalorder %s114, %s117
      %p126 = scmp.eq.s32.totalorder %s20, 1
      %p127 = por %p125, %p126
      %p128 = scmp.ne.s32.totalorder %s117, %s118
      %p129 = scmp.eq.s32.totalorder %s20, 0
      %p130 = por %p128, %p129
      %p131 = scmp.ne.s32.totalorder %s117, %s118
      %p132 = scmp.eq.s32.totalorder %s21, 1
      %p133 = por %p131, %p132
      %p135 = scmp.ne.s32.totalorder %s118, %s134
      %p136 = scmp.eq.s32.totalorder %s21, 0
      %p137 = por %p135, %p136
      %p138 = scmp.le.s32.totalorder 1, %s15
      %p139 = scmp.lt.s32.totalorder %s15, 3
      %p140 = pnand %p138, %p139
      %p141 = pneg %p140
      // Predicated region
      $region9: #{dnn_forward.1} parent=5 // pred_check
        _
      $region10: #{dnn_forward.1} parent=5 // pred_check_branch
        %143 = sbr.rel (%p140) target = $region12
      $region11: #{dnn_forward.1} parent=5 // pred_region
        %s144 = ssub.s32 %s15, 1
        // Predicated region
        $region13: #{dnn_forward.1} parent=11 // pred_check
          %p145 = pneg %p62
        $region14: #{dnn_forward.1} parent=11 // pred_check_branch
          %147 = sbr.rel (%p145) target = $region16
        $region15: #{dnn_forward.1} parent=11 // pred_region
          %149 = vsyncadd [#allocation3], 0
          %s150 = sshll.u32 %s1, 4
          %s151 = int_to_ptr.hbm [resolvable:$true] %s150
          %s152 = sshll.u32 [#allocation2], 4
          %s153 = int_to_ptr.vmem [resolvable:$true] %s152
          %158 = dma.hbm_to_vmem [thread:$0]  %s151, 2048, %s153, [#allocation3], 128, 128, 8
        $region16: #{dnn_forward.1} parent=11 // pred_fallthru
          _
        // Predicated region
        $region17: #{dnn_forward.1} parent=11 // pred_check
          %p159 = pneg %p83
        $region18: #{dnn_forward.1} parent=11 // pred_check_branch
          %161 = sbr.rel (%p159) target = $region20
        $region19: #{dnn_forward.1} parent=11 // pred_region
          %163 = vsyncadd [#allocation6], 0
          %s164 = sshll.u32 %s2, 4
          %s165 = int_to_ptr.hbm [resolvable:$true] %s164
          %s166 = sshll.u32 [#allocation5], 4
          %s167 = int_to_ptr.vmem [resolvable:$true] %s166
          %172 = dma.hbm_to_vmem [thread:$0]  %s165, 2048, %s167, [#allocation6], 64, 64, 4
        $region20: #{dnn_forward.1} parent=11 // pred_fallthru
          _
        // Predicated region
        $region21: #{dnn_forward.1} parent=11 // pred_check
          %p173 = pneg %p104
        $region22: #{dnn_forward.1} parent=11 // pred_check_branch
          %175 = sbr.rel (%p173) target = $region24
        $region23: #{dnn_forward.1} parent=11 // pred_region
          _
        $region24: #{dnn_forward.1} parent=11 // pred_fallthru
          _
      $region12: #{dnn_forward.1} parent=5 // pred_fallthru
        _
      %p176 = scmp.lt.s32.totalorder %s15, 2
      // Predicated region
      $region25: #{dnn_forward.1} parent=5 // pred_check
        %p177 = pneg %p176
      $region26: #{dnn_forward.1} parent=5 // pred_check_branch
        %179 = sbr.rel (%p177) target = $region28
      $region27: #{dnn_forward.1} parent=5 // pred_region
        // Predicated region
        $region29: #{dnn_forward.1} parent=27 // pred_check
          %p180 = pneg %p35
        $region30: #{dnn_forward.1} parent=27 // pred_check_branch
          %182 = sbr.rel (%p180) target = $region32
        $region31: #{dnn_forward.1} parent=27 // pred_region
          %p183 = scmp.lt.s32.totalorder %s15, 1
          %s184 = scalar_select %p183, %s15, 1
          %s185 = smul.addr %s184, 8
          %s186 = scalar_lea.vmem %s0, %s185
        $region32: #{dnn_forward.1} parent=27 // pred_fallthru
          _
      $region28: #{dnn_forward.1} parent=5 // pred_fallthru
        _
      %p187 = scmp.le.s32.totalorder 1, %s15
      %p188 = scmp.lt.s32.totalorder %s15, 3
      %p189 = pnand %p187, %p188
      %p190 = pneg %p189
      // Predicated region
      $region33: #{dnn_forward.1} parent=5 // pred_check
        _
      $region34: #{dnn_forward.1} parent=5 // pred_check_branch
        %192 = sbr.rel (%p189) target = $region36
      $region35: #{dnn_forward.1} parent=5 // pred_region
        %s193 = ssub.s32 %s15, 1
        // Predicated region
        $region37: #{dnn_forward.1} parent=35 // pred_check
          %p194 = pneg %p62
        $region38: #{dnn_forward.1} parent=35 // pred_check_branch
          %196 = sbr.rel (%p194) target = $region40
        $region39: #{dnn_forward.1} parent=35 // pred_region
          %198 = dma.done [#allocation3], 2048
        $region40: #{dnn_forward.1} parent=35 // pred_fallthru
          _
        // Predicated region
        $region41: #{dnn_forward.1} parent=35 // pred_check
          %p199 = pneg %p83
        $region42: #{dnn_forward.1} parent=35 // pred_check_branch
          %201 = sbr.rel (%p199) target = $region44
        $region43: #{dnn_forward.1} parent=35 // pred_region
          %203 = dma.done [#allocation6], 2048
        $region44: #{dnn_forward.1} parent=35 // pred_fallthru
          _
        %p204 = scmp.lt.s32.totalorder %s20, 1
        %s205 = scalar_select %p204, %s20, 1
        %s206 = smul.addr %s205, 8
        %s207 = scalar_lea.vmem %s0, %s206
        %p208 = pneg %p41
        %p209 = pneg %p38
        %p210 = pneg %p62
        %p211 = pneg %p59
        %p212 = pneg %p83
        %p213 = pneg %p80
        %p214 = pneg %p104
        %p215 = pneg %p101
        %p216 = pneg %p130
        %p217 = pneg %p127
        %s218 = sand.u32 %s117, 1
        %s219 = scalar_lea.sflag [#allocation4], %s218
        %s220 = sand.u32 %s117, 1
        %s221 = smul.addr %s220, 8
        %s222 = scalar_lea.vmem [#allocation7], %s221
        %p223 = scmp.lt.s32.totalorder %s20, 1
        %s224 = scalar_select %p223, %s20, 1
        %s225 = smul.addr %s224, 8
        %s226 = scalar_lea.vmem %s0, %s225
        %v227 = vld [vmem:[%s226] sm:$0xff]
        %v228 = vpack.c.bf16 %v227, %v227
        %v229 = vld [vmem:[#allocation2] sm:$0xff]
        %v230 = vld [vmem:[#allocation2 + $0x8] sm:$0xff]
        %v231 = vld [vmem:[#allocation2 + $0x10] sm:$0xff]
        %v232 = vld [vmem:[#allocation2 + $0x18] sm:$0xff]
        %v233 = vld [vmem:[#allocation2 + $0x20] sm:$0xff]
        %v234 = vld [vmem:[#allocation2 + $0x28] sm:$0xff]
        %v235 = vld [vmem:[#allocation2 + $0x30] sm:$0xff]
        %v236 = vld [vmem:[#allocation2 + $0x38] sm:$0xff]
        %v237 = vld [vmem:[#allocation2 + $0x40] sm:$0xff]
        %v238 = vld [vmem:[#allocation2 + $0x48] sm:$0xff]
        %v239 = vld [vmem:[#allocation2 + $0x50] sm:$0xff]
        %v240 = vld [vmem:[#allocation2 + $0x58] sm:$0xff]
        %v241 = vld [vmem:[#allocation2 + $0x60] sm:$0xff]
        %v242 = vld [vmem:[#allocation2 + $0x68] sm:$0xff]
        %v243 = vld [vmem:[#allocation2 + $0x70] sm:$0xff]
        %v244 = vld [vmem:[#allocation2 + $0x78] sm:$0xff]
        %v261 = vunpack.c.l.b16 %v229
        %v262 = vunpack.c.h.b16 %v229
        %v263 = vunpack.c.l.b16 %v230
        %v264 = vunpack.c.h.b16 %v230
        %v265 = vunpack.c.l.b16 %v231
        %v266 = vunpack.c.h.b16 %v231
        %v267 = vunpack.c.l.b16 %v232
        %v268 = vunpack.c.h.b16 %v232
        %v269 = vunpack.c.l.b16 %v233
        %v270 = vunpack.c.h.b16 %v233
        %v271 = vunpack.c.l.b16 %v234
        %v272 = vunpack.c.h.b16 %v234
        %v273 = vunpack.c.l.b16 %v235
        %v274 = vunpack.c.h.b16 %v235
        %v275 = vunpack.c.l.b16 %v236
        %v276 = vunpack.c.h.b16 %v236
        %v277 = vunpack.c.l.b16 %v237
        %v278 = vunpack.c.h.b16 %v237
        %v279 = vunpack.c.l.b16 %v238
        %v280 = vunpack.c.h.b16 %v238
        %v281 = vunpack.c.l.b16 %v239
        %v282 = vunpack.c.h.b16 %v239
        %v283 = vunpack.c.l.b16 %v240
        %v284 = vunpack.c.h.b16 %v240
        %v285 = vunpack.c.l.b16 %v241
        %v286 = vunpack.c.h.b16 %v241
        %v287 = vunpack.c.l.b16 %v242
        %v288 = vunpack.c.h.b16 %v242
        %v289 = vunpack.c.l.b16 %v243
        %v290 = vunpack.c.h.b16 %v243
        %v291 = vunpack.c.l.b16 %v244
        %v292 = vunpack.c.h.b16 %v244
        %v293 = vpack.c.b16 %v263, %v261
        %v294 = vpack.c.b16 %v264, %v262
        %v295 = vpack.c.b16 %v267, %v265
        %v296 = vpack.c.b16 %v268, %v266
        %v297 = vpack.c.b16 %v271, %v269
        %v298 = vpack.c.b16 %v272, %v270
        %v299 = vpack.c.b16 %v275, %v273
        %v300 = vpack.c.b16 %v276, %v274
        %v301 = vpack.c.b16 %v279, %v277
        %v302 = vpack.c.b16 %v280, %v278
        %v303 = vpack.c.b16 %v283, %v281
        %v304 = vpack.c.b16 %v284, %v282
        %v305 = vpack.c.b16 %v287, %v285
        %v306 = vpack.c.b16 %v288, %v286
        %v307 = vpack.c.b16 %v291, %v289
        %v308 = vpack.c.b16 %v292, %v290
        %325 = vmatpush.bf16.msra.mxu0 %v307
        %326 = vmatpush.bf16.msra.mxu0 %v305
        %327 = vmatpush.bf16.msra.mxu0 %v303
        %328 = vmatpush.bf16.msra.mxu0 %v301
        %329 = vmatpush.bf16.msra.mxu0 %v299
        %330 = vmatpush.bf16.msra.mxu0 %v297
        %331 = vmatpush.bf16.msra.mxu0 %v295
        %332 = vmatpush.bf16.msra.mxu0 %v293
        %333 = vmatmul.bf16.gmra.mxu0 %v228
        %v334 = vpop.f32.mrf.mxu0
        %v335 = vadd.f32 0.0, %v334
        %v336 = vpop.f32.mrf.mxu0
        %337 = vdwg.mxu0
        %338 = vmatpush.bf16.msra.mxu0 %v308
        %339 = vmatpush.bf16.msra.mxu0 %v306
        %340 = vmatpush.bf16.msra.mxu0 %v304
        %341 = vmatpush.bf16.msra.mxu0 %v302
        %342 = vmatpush.bf16.msra.mxu0 %v300
        %343 = vmatpush.bf16.msra.mxu0 %v298
        %344 = vmatpush.bf16.msra.mxu0 %v296
        %345 = vmatpush.bf16.msra.mxu0 %v294
        %346 = vmatmul.bf16.gmra.mxu0 %v228
        %v347 = vpop.f32.mrf.mxu0
        %v348 = vadd.f32 0.0, %v347
        %v349 = vpop.f32.mrf.mxu0
        %350 = vdwg.mxu0
        %v351 = vmax.f32 %v335, 0.0
        %v352 = vmax.f32 %v348, 0.0
        %v353 = vpack.c.bf16 %v351, %v351
        %v354 = vpack.c.bf16 %v352, %v352
        %v355 = vld [vmem:[#allocation5] sm:$0xf]
        %v356 = vld [vmem:[#allocation5 + $0x4] sm:$0xf]
        %v357 = vld [vmem:[#allocation5 + $0x8] sm:$0xf]
        %v358 = vld [vmem:[#allocation5 + $0xc] sm:$0xf]
        %v359 = vld [vmem:[#allocation5 + $0x10] sm:$0xf]
        %v360 = vld [vmem:[#allocation5 + $0x14] sm:$0xf]
        %v361 = vld [vmem:[#allocation5 + $0x18] sm:$0xf]
        %v362 = vld [vmem:[#allocation5 + $0x1c] sm:$0xf]
        %v363 = vld [vmem:[#allocation5 + $0x20] sm:$0xf]
        %v364 = vld [vmem:[#allocation5 + $0x24] sm:$0xf]
        %v365 = vld [vmem:[#allocation5 + $0x28] sm:$0xf]
        %v366 = vld [vmem:[#allocation5 + $0x2c] sm:$0xf]
        %v367 = vld [vmem:[#allocation5 + $0x30] sm:$0xf]
        %v368 = vld [vmem:[#allocation5 + $0x34] sm:$0xf]
        %v369 = vld [vmem:[#allocation5 + $0x38] sm:$0xf]
        %v370 = vld [vmem:[#allocation5 + $0x3c] sm:$0xf]
        %v371 = vld [vmem:[#allocation5 + $0x40] sm:$0xf]
        %v372 = vld [vmem:[#allocation5 + $0x44] sm:$0xf]
        %v373 = vld [vmem:[#allocation5 + $0x48] sm:$0xf]
        %v374 = vld [vmem:[#allocation5 + $0x4c] sm:$0xf]
        %v375 = vld [vmem:[#allocation5 + $0x50] sm:$0xf]
        %v376 = vld [vmem:[#allocation5 + $0x54] sm:$0xf]
        %v377 = vld [vmem:[#allocation5 + $0x58] sm:$0xf]
        %v378 = vld [vmem:[#allocation5 + $0x5c] sm:$0xf]
        %v379 = vld [vmem:[#allocation5 + $0x60] sm:$0xf]
        %v380 = vld [vmem:[#allocation5 + $0x64] sm:$0xf]
        %v381 = vld [vmem:[#allocation5 + $0x68] sm:$0xf]
        %v382 = vld [vmem:[#allocation5 + $0x6c] sm:$0xf]
        %v383 = vld [vmem:[#allocation5 + $0x70] sm:$0xf]
        %v384 = vld [vmem:[#allocation5 + $0x74] sm:$0xf]
        %v385 = vld [vmem:[#allocation5 + $0x78] sm:$0xf]
        %v386 = vld [vmem:[#allocation5 + $0x7c] sm:$0xf]
        %v419 = vunpack.c.l.b16 %v355
        %v420 = vunpack.c.l.b16 %v356
        %v421 = vunpack.c.l.b16 %v357
        %v422 = vunpack.c.l.b16 %v358
        %v423 = vunpack.c.l.b16 %v359
        %v424 = vunpack.c.l.b16 %v360
        %v425 = vunpack.c.l.b16 %v361
        %v426 = vunpack.c.l.b16 %v362
        %v427 = vunpack.c.l.b16 %v363
        %v428 = vunpack.c.l.b16 %v364
        %v429 = vunpack.c.l.b16 %v365
        %v430 = vunpack.c.l.b16 %v366
        %v431 = vunpack.c.l.b16 %v367
        %v432 = vunpack.c.l.b16 %v368
        %v433 = vunpack.c.l.b16 %v369
        %v434 = vunpack.c.l.b16 %v370
        %v435 = vunpack.c.l.b16 %v371
        %v436 = vunpack.c.l.b16 %v372
        %v437 = vunpack.c.l.b16 %v373
        %v438 = vunpack.c.l.b16 %v374
        %v439 = vunpack.c.l.b16 %v375
        %v440 = vunpack.c.l.b16 %v376
        %v441 = vunpack.c.l.b16 %v377
        %v442 = vunpack.c.l.b16 %v378
        %v443 = vunpack.c.l.b16 %v379
        %v444 = vunpack.c.l.b16 %v380
        %v445 = vunpack.c.l.b16 %v381
        %v446 = vunpack.c.l.b16 %v382
        %v447 = vunpack.c.l.b16 %v383
        %v448 = vunpack.c.l.b16 %v384
        %v449 = vunpack.c.l.b16 %v385
        %v450 = vunpack.c.l.b16 %v386
        %v451 = vpack.c.b16 %v420, %v419
        %v452 = vpack.c.b16 %v422, %v421
        %v453 = vpack.c.b16 %v424, %v423
        %v454 = vpack.c.b16 %v426, %v425
        %v455 = vpack.c.b16 %v428, %v427
        %v456 = vpack.c.b16 %v430, %v429
        %v457 = vpack.c.b16 %v432, %v431
        %v458 = vpack.c.b16 %v434, %v433
        %v459 = vpack.c.b16 %v436, %v435
        %v460 = vpack.c.b16 %v438, %v437
        %v461 = vpack.c.b16 %v440, %v439
        %v462 = vpack.c.b16 %v442, %v441
        %v463 = vpack.c.b16 %v444, %v443
        %v464 = vpack.c.b16 %v446, %v445
        %v465 = vpack.c.b16 %v448, %v447
        %v466 = vpack.c.b16 %v450, %v449
        %483 = vmatpush.bf16.msra.mxu0 %v458
        %484 = vmatpush.bf16.msra.mxu0 %v457
        %485 = vmatpush.bf16.msra.mxu0 %v456
        %486 = vmatpush.bf16.msra.mxu0 %v455
        %487 = vmatpush.bf16.msra.mxu0 %v454
        %488 = vmatpush.bf16.msra.mxu0 %v453
        %489 = vmatpush.bf16.msra.mxu0 %v452
        %490 = vmatpush.bf16.msra.mxu0 %v451
        %491 = vmatmul.bf16.gmra.mxu0 %v353
        %v492 = vpop.f32.mrf.mxu0
        %v493 = vadd.f32 0.0, %v492
        %v494 = vpop.f32.mrf.mxu0
        %495 = vdwg.mxu0
        %496 = vmatpush.bf16.msra.mxu0 %v466
        %497 = vmatpush.bf16.msra.mxu0 %v465
        %498 = vmatpush.bf16.msra.mxu0 %v464
        %499 = vmatpush.bf16.msra.mxu0 %v463
        %500 = vmatpush.bf16.msra.mxu0 %v462
        %501 = vmatpush.bf16.msra.mxu0 %v461
        %502 = vmatpush.bf16.msra.mxu0 %v460
        %503 = vmatpush.bf16.msra.mxu0 %v459
        %504 = vmatmul.bf16.gmra.mxu0 %v354
        %v505 = vpop.f32.mrf.mxu0
        %v506 = vadd.f32 %v493, %v505
        %v507 = vpop.f32.mrf.mxu0
        %508 = vdwg.mxu0
        %v509 = vmax.f32 %v506, 0.0
        %v510 = vpack.c.bf16 %v509, %v509
        %v511 = vld [vmem:[%s3] sm:$0xf]
        %v512 = vld [vmem:[%s3 + $0x4] sm:$0xf]
        %v513 = vld [vmem:[%s3 + $0x8] sm:$0xf]
        %v514 = vld [vmem:[%s3 + $0xc] sm:$0xf]
        %v515 = vld [vmem:[%s3 + $0x10] sm:$0xf]
        %v516 = vld [vmem:[%s3 + $0x14] sm:$0xf]
        %v517 = vld [vmem:[%s3 + $0x18] sm:$0xf]
        %v518 = vld [vmem:[%s3 + $0x1c] sm:$0xf]
        %v519 = vld [vmem:[%s3 + $0x20] sm:$0xf]
        %v520 = vld [vmem:[%s3 + $0x24] sm:$0xf]
        %v521 = vld [vmem:[%s3 + $0x28] sm:$0xf]
        %v522 = vld [vmem:[%s3 + $0x2c] sm:$0xf]
        %v523 = vld [vmem:[%s3 + $0x30] sm:$0xf]
        %v524 = vld [vmem:[%s3 + $0x34] sm:$0xf]
        %v525 = vld [vmem:[%s3 + $0x38] sm:$0xf]
        %v526 = vld [vmem:[%s3 + $0x3c] sm:$0xf]
        %v543 = vunpack.c.l.b16 %v511
        %v544 = vunpack.c.l.b16 %v512
        %v545 = vunpack.c.l.b16 %v513
        %v546 = vunpack.c.l.b16 %v514
        %v547 = vunpack.c.l.b16 %v515
        %v548 = vunpack.c.l.b16 %v516
        %v549 = vunpack.c.l.b16 %v517
        %v550 = vunpack.c.l.b16 %v518
        %v551 = vunpack.c.l.b16 %v519
        %v552 = vunpack.c.l.b16 %v520
        %v553 = vunpack.c.l.b16 %v521
        %v554 = vunpack.c.l.b16 %v522
        %v555 = vunpack.c.l.b16 %v523
        %v556 = vunpack.c.l.b16 %v524
        %v557 = vunpack.c.l.b16 %v525
        %v558 = vunpack.c.l.b16 %v526
        %v559 = vpack.c.b16 %v544, %v543
        %v560 = vpack.c.b16 %v546, %v545
        %v561 = vpack.c.b16 %v548, %v547
        %v562 = vpack.c.b16 %v550, %v549
        %v563 = vpack.c.b16 %v552, %v551
        %v564 = vpack.c.b16 %v554, %v553
        %v565 = vpack.c.b16 %v556, %v555
        %v566 = vpack.c.b16 %v558, %v557
        %575 = vmatpush.bf16.msra.mxu0 %v566
        %576 = vmatpush.bf16.msra.mxu0 %v565
        %577 = vmatpush.bf16.msra.mxu0 %v564
        %578 = vmatpush.bf16.msra.mxu0 %v563
        %579 = vmatpush.bf16.msra.mxu0 %v562
        %580 = vmatpush.bf16.msra.mxu0 %v561
        %581 = vmatpush.bf16.msra.mxu0 %v560
        %582 = vmatpush.bf16.msra.mxu0 %v559
        %583 = vmatmul.bf16.gmra.mxu0 %v510
        %v584 = vpop.f32.mrf.mxu0
        %v585 = vadd.f32 0.0, %v584
        %v586 = vpop.f32.mrf.mxu0
        %587 = vdwg.mxu0
        %588 = vst [vmem:[%s222] sm:$0xff] %v585
        %s589 = sand.u32 %s117, 1
        %s590 = scalar_lea.sflag [#allocation4], %s589
        %s591 = sand.u32 %s117, 1
        %s592 = smul.addr %s591, 8
        %s593 = scalar_lea.vmem [#allocation7], %s592
        // Predicated region
        $region45: #{dnn_forward.1} parent=35 // pred_check
          %p594 = pneg %p127
        $region46: #{dnn_forward.1} parent=35 // pred_check_branch
          %596 = sbr.rel (%p594) target = $region48
        $region47: #{dnn_forward.1} parent=35 // pred_region
          %598 = vsyncadd %s590, 0
          %s599 = smul.addr %s20, 8
          %s600 = scalar_lea.hbm %s4, %s599
          %s602 = sshll.u32 %s593, 4
          %s603 = int_to_ptr.vmem [resolvable:$true] %s602
          %s604 = sshll.u32 %s600, 4
          %s605 = int_to_ptr.hbm [resolvable:$true] %s604
          %607 = dma.vmem_to_hbm [thread:$0]  %s603, 128, %s605, %s590
        $region48: #{dnn_forward.1} parent=35 // pred_fallthru
          _
      $region36: #{dnn_forward.1} parent=5 // pred_fallthru
        _
      %p608 = scmp.le.s32.totalorder 2, %s15
      // Predicated region
      $region49: #{dnn_forward.1} parent=5 // pred_check
        %p609 = pneg %p608
      $region50: #{dnn_forward.1} parent=5 // pred_check_branch
        %611 = sbr.rel (%p609) target = $region52
      $region51: #{dnn_forward.1} parent=5 // pred_region
        %s612 = ssub.s32 %s15, 2
        // Predicated region
        $region53: #{dnn_forward.1} parent=51 // pred_check
          %p613 = pneg %p133
        $region54: #{dnn_forward.1} parent=51 // pred_check_branch
          %615 = sbr.rel (%p613) target = $region56
        $region55: #{dnn_forward.1} parent=51 // pred_region
          %s616 = sand.u32 %s118, 1
          %s617 = scalar_lea.sflag [#allocation4], %s616
          %s618 = sand.u32 %s118, 1
          %s619 = smul.addr %s618, 8
          %s620 = scalar_lea.vmem [#allocation7], %s619
          %622 = dma.done %s617, 128
        $region56: #{dnn_forward.1} parent=51 // pred_fallthru
          _
      $region52: #{dnn_forward.1} parent=5 // pred_fallthru
        _
    $region6: #{dnn_forward.1} parent=1 // loop_footer
      %s19 = sadd.s32 1, %s15
    $region7: #{dnn_forward.1} parent=1 // loop_footer_branch
      %14 = sbr.rel target = $region3
    $region8: #{dnn_forward.1} parent=1 // loop_exit
      _
    %623 = vsyncpa [#allocation3], 1
    %s624 = scalar_lea.sflag [#allocation3], 1
    %625 = vsyncpa %s624, 1
    %626 = vsyncpa [#allocation6], 1
    %627 = vsyncpa [#allocation4], 1
    %s628 = scalar_lea.sflag [#allocation4], 1
    %629 = vsyncpa %s628, 1

</llo_original>
